<compile_context>
chip_gen: v7x
topology: tpu7x:2x2x1
jax: 0.10.0
libtpu: 0.0.40
codegen_flags: <defaults>
</compile_context>

<pallas_src>
import jax
import jax.numpy as jnp
from jax import lax
from jax.experimental import pallas as pl
from jax.experimental.pallas import tpu as pltpu


def _add_modules_kernel(x_ref, w_ref, b_ref, o_ref):
    # x_ref: (TB, Cin_p, Lp)    batch tile of inputs (NCL layout, lane-padded)
    # w_ref: (Cout_p, 3*Cin_p)  folded conv weights, taps stacked on contraction axis
    # b_ref: (Cout_p, 1)        folded bias (broadcasts along lanes)
    # o_ref: (TB, Cout_p, Lp)   output tile
    Lp = x_ref.shape[-1]
    w = w_ref[...]
    b = b_ref[...]
    for bt in range(x_ref.shape[0]):           # static unroll over the small batch tile
        x = x_ref[bt]                           # (Cin_p, Lp)
        # k=3 / pad=1 "same" conv via lane rotations (XLU slot, non-negative shifts).
        # The wrapper guarantees >= 1 trailing zero column on the lane axis, so the
        # wrap-around columns are zeros and no boundary masking is needed.
        x_prev = pltpu.roll(x, shift=1, axis=1)         # x_prev[:, j] = x[:, j-1]
        x_next = pltpu.roll(x, shift=Lp - 1, axis=1)    # x_next[:, j] = x[:, j+1]
        xs = jnp.concatenate([x_prev, x, x_next], axis=0)   # (3*Cin_p, Lp) sublane concat
        acc = jnp.dot(w, xs, preferred_element_type=jnp.float32) + b
        o_ref[bt] = acc.astype(o_ref.dtype)


def add_modules_conv1d(x_ncl, w1, b1, w2, b2, *, second_scale=1.0, scaling_factor=1.0):
    """(conv1(x) + second_scale * conv2(x)) / scaling_factor, both convs k=3 / pad=1.

    x_ncl: (B, Cin, L) in PyTorch Conv1d layout; returns (B, Cout, L).
    NOTE: folding (w1 + s*w2)/f into one conv is valid only because both
    submodules are linear Conv1d applied to the same input.
    """
    B, Cin, L = x_ncl.shape
    Cout, Cin2, K = w1.shape
    assert Cin2 == Cin and K == 3
    assert w2.shape == w1.shape and b1.shape == (Cout,) and b2.shape == b1.shape

    dtype = x_ncl.dtype
    itemsize = jnp.dtype(dtype).itemsize

    # ---- Fold both branches + the divide into ONE conv (linearity). ----------
    inv = 1.0 / float(scaling_factor)
    s = float(second_scale)
    w = ((w1 + s * w2) * inv).astype(dtype)          # (Cout, Cin, 3)
    b = ((b1 + s * b2) * inv).astype(jnp.float32)    # (Cout,)

    # ---- Padded / stacked layouts. -------------------------------------------
    # Lane axis padded to a 128 multiple with >= 1 trailing zero column (so roll
    # wrap-around is harmless); channel dims padded to sublane multiples of 8.
    Cin_p = pl.cdiv(Cin, 8) * 8
    Cout_p = pl.cdiv(Cout, 8) * 8
    Lp = pl.cdiv(L + 1, 128) * 128

    w_pad = jnp.zeros((Cout_p, Cin_p, 3), dtype).at[:Cout, :Cin, :].set(w)
    # Taps stacked along the contraction axis: [W_tap0 | W_tap1 | W_tap2].
    w_stacked = jnp.concatenate([w_pad[:, :, 0], w_pad[:, :, 1], w_pad[:, :, 2]], axis=1)
    b_col = jnp.zeros((Cout_p, 1), jnp.float32).at[:Cout, 0].set(b)

    # ---- Batch tiling: >= 512 lanes of work per grid step, VMEM-bounded. -----
    per_b_bytes = (Cin_p + Cout_p) * Lp * itemsize
    tb = max(1, min(B, pl.cdiv(512, Lp)))
    tb = max(1, min(tb, (8 << 20) // max(per_b_bytes, 1)))   # keep tiles modest (v7x: 64 MiB VMEM)
    B_p = pl.cdiv(B, tb) * tb

    x_p = jnp.zeros((B_p, Cin_p, Lp), dtype).at[:B, :Cin, :L].set(x_ncl)

    # VMEM budget: double-buffered x/out tiles + resident weights + f32 temporaries.
    x_tile = tb * Cin_p * Lp * itemsize
    o_tile = tb * Cout_p * Lp * itemsize
    w_bytes = Cout_p * (3 * Cin_p + 128) * 4
    temps = tb * (5 * Cin_p + Cout_p) * Lp * 4
    vmem_limit = int(min(max(2 * (x_tile + o_tile) + 2 * w_bytes + temps, 32 << 20), 64 << 20))

    out = pl.pallas_call(
        _add_modules_kernel,
        out_shape=jax.ShapeDtypeStruct((B_p, Cout_p, Lp), dtype),
        grid_spec=pltpu.PrefetchScalarGridSpec(
            num_scalar_prefetch=0,
            grid=(B_p // tb,),
            in_specs=[
                pl.BlockSpec((tb, Cin_p, Lp), lambda bi: (bi, 0, 0)),      # x batch tile
                pl.BlockSpec((Cout_p, 3 * Cin_p), lambda bi: (0, 0)),      # weights (resident)
                pl.BlockSpec((Cout_p, 1), lambda bi: (0, 0)),              # bias (resident)
            ],
            out_specs=pl.BlockSpec((tb, Cout_p, Lp), lambda bi: (bi, 0, 0)),
        ),
        compiler_params=pltpu.CompilerParams(
            dimension_semantics=("parallel",),        # batch axis shardable across v7x's 2 TCs
            vmem_limit_bytes=vmem_limit,
        ),
    )(x_p, w_stacked, b_col)

    return out[:B, :Cout, :L]


if __name__ == "__main__":
    B, Cin, Cout, L, K = 2, 4, 8, 16, 3
    second_scale, scaling_factor = 0.5, 2.0

    key = jax.random.PRNGKey(0)
    k1, k2, k3, k4, k5 = jax.random.split(key, 5)
    x = jax.random.normal(k1, (B, Cin, L), jnp.float32)
    w1 = jax.random.normal(k2, (Cout, Cin, K), jnp.float32) * 0.1
    b1 = jax.random.normal(k3, (Cout,), jnp.float32) * 0.1
    w2 = jax.random.normal(k4, (Cout, Cin, K), jnp.float32) * 0.1
    b2 = jax.random.normal(k5, (Cout,), jnp.float32) * 0.1

    out = add_modules_conv1d(x, w1, b1, w2, b2,
                             second_scale=second_scale,
                             scaling_factor=scaling_factor)
    out = jax.block_until_ready(out)

    # Pure-JAX reference (mirrors the PyTorch forward exactly: two convs, scaled add, divide).
    def conv1d_ref(xn, w, b):
        y = lax.conv_general_dilated(
            xn, w, window_strides=(1,), padding=((1, 1),),
            dimension_numbers=("NCH", "OIH", "NCH"))
        return y + b[None, :, None]

    ref = (conv1d_ref(x, w1, b1) + second_scale * conv1d_ref(x, w2, b2)) / scaling_factor
    assert out.shape == (B, Cout, L)
    assert jnp.allclose(out, ref, atol=1e-4, rtol=1e-4)

    print("KERNEL_OK")
</pallas_src>

<mosaic_0001>
module attributes {stable_mosaic.version = 11 : i64} {
  func.func @_add_modules_kernel(%arg0: i32, %arg1: memref<2x8x128xf32, #tpu.memory_space<vmem>>, %arg2: memref<8x24xf32, #tpu.memory_space<vmem>>, %arg3: memref<8x1xf32, #tpu.memory_space<vmem>>, %arg4: memref<2x8x128xf32, #tpu.memory_space<vmem>>) attributes {dimension_semantics = [#tpu.dimension_semantics<parallel>], iteration_bounds = array<i64: 1>, scalar_prefetch = 0 : i64, scratch_operands = 0 : i64, tpu.core_type = #tpu.core_type<tc>, window_params = [{transform_indices = @transform_0, window_bounds = array<i64: 2, 8, 128>}, {pipeline_mode = #tpu.pipeline_mode<synchronous>, transform_indices = @transform_1, window_bounds = array<i64: 8, 24>}, {pipeline_mode = #tpu.pipeline_mode<synchronous>, transform_indices = @transform_2, window_bounds = array<i64: 8, 1>}, {transform_indices = @transform_3, window_bounds = array<i64: 2, 8, 128>}]} {
    %c0 = arith.constant 0 : index
    %c0_0 = arith.constant 0 : index
    %0 = vector.load %arg2[%c0, %c0_0] : memref<8x24xf32, #tpu.memory_space<vmem>>, vector<8x24xf32>
    %c0_1 = arith.constant 0 : index
    %c0_2 = arith.constant 0 : index
    %1 = vector.load %arg3[%c0_1, %c0_2] : memref<8x1xf32, #tpu.memory_space<vmem>>, vector<8x1xf32>
    %c0_3 = arith.constant 0 : index
    %c0_4 = arith.constant 0 : index
    %c0_5 = arith.constant 0 : index
    %2 = vector.load %arg1[%c0_3, %c0_4, %c0_5] : memref<2x8x128xf32, #tpu.memory_space<vmem>>, vector<1x8x128xf32>
    %3 = vector.shape_cast %2 : vector<1x8x128xf32> to vector<8x128xf32>
    %c1_i32 = arith.constant 1 : i32
    %4 = tpu.dynamic_rotate %3 by %c1_i32 dim 1 : vector<8x128xf32>, i32 -> vector<8x128xf32>
    %c127_i32 = arith.constant 127 : i32
    %5 = tpu.dynamic_rotate %3 by %c127_i32 dim 1 : vector<8x128xf32>, i32 -> vector<8x128xf32>
    %6 = tpu.concatenate %4, %3, %5 in 0 : vector<8x128xf32>, vector<8x128xf32>, vector<8x128xf32> -> vector<24x128xf32>
    %cst = arith.constant dense<0.000000e+00> : vector<8x128xf32>
    %7 = tpu.matmul %0, %6, %cst {dimension_numbers = #tpu.dot_dimension_numbers<[1], [0], [0], [1], [0, 0, 1, 1], [], []>} : vector<8x24xf32>, vector<24x128xf32>, vector<8x128xf32> -> vector<8x128xf32>
    %8 = vector.broadcast %1 : vector<8x1xf32> to vector<8x128xf32>
    %9 = arith.addf %7, %8 : vector<8x128xf32>
    %c0_6 = arith.constant 0 : index
    %c0_7 = arith.constant 0 : index
    %c0_8 = arith.constant 0 : index
    %10 = vector.load %arg4[%c0_6, %c0_7, %c0_8] : memref<2x8x128xf32, #tpu.memory_space<vmem>>, vector<1x8x128xf32>
    %11 = vector.shape_cast %10 : vector<1x8x128xf32> to vector<8x128xf32>
    %12 = vector.shape_cast %9 : vector<8x128xf32> to vector<1x8x128xf32>
    tpu.vector_store %arg4[%c0_6, %c0_7, %c0_8], %12 {strides = array<i32>} : memref<2x8x128xf32, #tpu.memory_space<vmem>>, vector<1x8x128xf32>,
    %c1 = arith.constant 1 : index
    %c0_9 = arith.constant 0 : index
    %c0_10 = arith.constant 0 : index
    %13 = vector.load %arg1[%c1, %c0_9, %c0_10] : memref<2x8x128xf32, #tpu.memory_space<vmem>>, vector<1x8x128xf32>
    %14 = vector.shape_cast %13 : vector<1x8x128xf32> to vector<8x128xf32>
    %c1_i32_11 = arith.constant 1 : i32
    %15 = tpu.dynamic_rotate %14 by %c1_i32_11 dim 1 : vector<8x128xf32>, i32 -> vector<8x128xf32>
    %c127_i32_12 = arith.constant 127 : i32
    %16 = tpu.dynamic_rotate %14 by %c127_i32_12 dim 1 : vector<8x128xf32>, i32 -> vector<8x128xf32>
    %17 = tpu.concatenate %15, %14, %16 in 0 : vector<8x128xf32>, vector<8x128xf32>, vector<8x128xf32> -> vector<24x128xf32>
    %cst_13 = arith.constant dense<0.000000e+00> : vector<8x128xf32>
    %18 = tpu.matmul %0, %17, %cst_13 {dimension_numbers = #tpu.dot_dimension_numbers<[1], [0], [0], [1], [0, 0, 1, 1], [], []>} : vector<8x24xf32>, vector<24x128xf32>, vector<8x128xf32> -> vector<8x128xf32>
    %19 = vector.broadcast %1 : vector<8x1xf32> to vector<8x128xf32>
    %20 = arith.addf %18, %19 : vector<8x128xf32>
    %c1_14 = arith.constant 1 : index
    %c0_15 = arith.constant 0 : index
    %c0_16 = arith.constant 0 : index
    %21 = vector.load %arg4[%c1_14, %c0_15, %c0_16] : memref<2x8x128xf32, #tpu.memory_space<vmem>>, vector<1x8x128xf32>
    %22 = vector.shape_cast %21 : vector<1x8x128xf32> to vector<8x128xf32>
    %23 = vector.shape_cast %20 : vector<8x128xf32> to vector<1x8x128xf32>
    tpu.vector_store %arg4[%c1_14, %c0_15, %c0_16], %23 {strides = array<i32>} : memref<2x8x128xf32, #tpu.memory_space<vmem>>, vector<1x8x128xf32>,
    return
  }
  func.func @transform_0(%arg0: i32) -> (i32, i32, i32) {
    %c0_i32 = arith.constant 0 : i32
    %c0_i32_0 = arith.constant 0 : i32
    %c0_i32_1 = arith.constant 0 : i32
    return %arg0, %c0_i32, %c0_i32_0 : i32, i32, i32
  }
  func.func @transform_1(%arg0: i32) -> (i32, i32) {
    %c0_i32 = arith.constant 0 : i32
    %c0_i32_0 = arith.constant 0 : i32
    %c0_i32_1 = arith.constant 0 : i32
    return %c0_i32, %c0_i32_0 : i32, i32
  }
  func.func @transform_2(%arg0: i32) -> (i32, i32) {
    %c0_i32 = arith.constant 0 : i32
    %c0_i32_0 = arith.constant 0 : i32
    %c0_i32_1 = arith.constant 0 : i32
    return %c0_i32, %c0_i32_0 : i32, i32
  }
  func.func @transform_3(%arg0: i32) -> (i32, i32, i32) {
    %c0_i32 = arith.constant 0 : i32
    %c0_i32_0 = arith.constant 0 : i32
    %c0_i32_1 = arith.constant 0 : i32
    return %arg0, %c0_i32, %c0_i32_0 : i32, i32, i32
  }
}

</mosaic_0001>

<llo_original>
// kernel: tpu_custom_call.1
$region0: #{tpu_custom_call.1}
  #allocation0 [shape = 'u32[]', space=smem, size = 0x4, offset = 0x4, fixed_abs, tag = 'smem constant byte address 0x4 - core index']
  #allocation1 [shape = 'u32[144,128]{1,0:T(1,128)}', space=vmem, size = 0x12000, scoped, tag = 'internal scratch']
  %s0 = inlined_call_operand.hbm [shape: f32[2,8,128], index: 0, kind: input, shape index: {}]
  %s1 = inlined_call_operand.vmem [shape: f32[8,24], index: 1, kind: input, shape index: {}]
  %s2 = inlined_call_operand.vmem [shape: f32[8,1], index: 2, kind: input, shape index: {}]
  %s3 = inlined_call_operand.hbm [shape: f32[2,8,128], index: 3, kind: output, shape index: {}]
  %s4 = sld [smem:[#allocation0]]
  $region26: #{tpu_custom_call.1} parent=0
    _
  %s6 = ssub.s32 1, %s4
  %s7 = scalar_select 0, %s6, %s4
  $region1: #{tpu_custom_call.1} parent=0
    #allocation2 [shape = 'u8[8192]{0}', space=vmem, size = 0x2000, scoped, tag = 'input window, operand 0, single buffered']
    #allocation3 [shape = 's32[1]{0}', space=sflag, size = 0x4, scoped, tag = 'scoped memory for tpu_custom_call.1']
    #allocation4 [shape = 's32[1]{0}', space=sflag, size = 0x4, scoped, tag = 'scoped memory for tpu_custom_call.1']
    #allocation5 [shape = 'u8[8192]{0}', space=vmem, size = 0x2000, scoped, tag = 'output window, operand 0, single buffered']
    %8 = vsyncpa [#allocation3], 0
    %9 = vsyncpa [#allocation4], 0
    // Predicated region
    $region2: #{tpu_custom_call.1} parent=1 // pred_check
      _
    $region3: #{tpu_custom_call.1} parent=1 // pred_check_branch
      %11 = sbr.rel (0) target = $region5
    $region4: #{tpu_custom_call.1} parent=1 // pred_region
      %s13 = ssub.s32 256, 256
      %14 = vsyncadd [#allocation3], %s13
      %s15 = sshll.u32 [#allocation2], 4
      %s16 = int_to_ptr.vmem [resolvable:$true] %s15
      %21 = dma.hbm_to_vmem [thread:$0]  %s0, 256, %s16, [#allocation3], 128, 128, 8
    $region5: #{tpu_custom_call.1} parent=1 // pred_fallthru
      _
    // Predicated region
    $region6: #{tpu_custom_call.1} parent=1 // pred_check
      _
    $region7: #{tpu_custom_call.1} parent=1 // pred_check_branch
      %23 = sbr.rel (0) target = $region9
    $region8: #{tpu_custom_call.1} parent=1 // pred_region
      _
    $region9: #{tpu_custom_call.1} parent=1 // pred_fallthru
      _
    // Predicated region
    $region10: #{tpu_custom_call.1} parent=1 // pred_check
      _
    $region11: #{tpu_custom_call.1} parent=1 // pred_check_branch
      %25 = sbr.rel (0) target = $region13
    $region12: #{tpu_custom_call.1} parent=1 // pred_region
      _
    $region13: #{tpu_custom_call.1} parent=1 // pred_fallthru
      _
    // Predicated region
    $region14: #{tpu_custom_call.1} parent=1 // pred_check
      _
    $region15: #{tpu_custom_call.1} parent=1 // pred_check_branch
      %27 = sbr.rel (0) target = $region17
    $region16: #{tpu_custom_call.1} parent=1 // pred_region
      %28 = dma.done [#allocation3], 256
    $region17: #{tpu_custom_call.1} parent=1 // pred_fallthru
      _
    %v29 = vld [vmem:[%s1] sm:$0xff]
    %v30 = vld [vmem:[%s2] sm:$0xff]
    %v31 = vld [vmem:[#allocation2] sm:$0xff]
    %32 = vrot.lane.b32.xlu0 %v31, 1
    %v33 = vpop.permute.xlu0 %32
    %34 = vrot.lane.b32.xlu0 %v31, 127
    %v35 = vpop.permute.xlu0 %34
    %37 = vset.pattern.permute.xlu0 0
    %38 = vperm.xlu0 %37, %v30
    %v39 = vpop.permute.xlu0 %38
    %vm41 = vcmask 195584
    %v43 = vsel %vm41, %v29, 0
    %45 = vmatprep.subr.mxu0 0.0
    %46 = vmatpush1.msra.mxu0 %v33
    %47 = vmatprep.subr.mxu0 0.0
    %48 = vmatpush1.msra.mxu0 %v31
    %49 = vmatprep.subr.mxu0 0.0
    %50 = vmatpush1.msra.mxu0 %v35
    %51 = vmatprep.subr.mxu0 0.0
    %52 = vmatpush1.msra.mxu0 0.0
    %53 = vmatprep.subr.mxu0 0.0
    %54 = vmatpush1.msra.mxu0 0.0
    %55 = vmatprep.subr.mxu0 0.0
    %56 = vmatpush1.msra.mxu0 0.0
    %57 = vmatprep.subr.mxu0 0.0
    %58 = vmatpush1.msra.mxu0 0.0
    %59 = vmatprep.subr.mxu0 0.0
    %60 = vmatpush1.msra.mxu0 0.0
    %61 = vmatprep.subr.mxu0 0.0
    %62 = vmatpush1.msra.mxu0 0.0
    %63 = vmatprep.subr.mxu0 0.0
    %64 = vmatpush1.msra.mxu0 0.0
    %65 = vmatprep.subr.mxu0 0.0
    %66 = vmatpush1.msra.mxu0 0.0
    %67 = vmatprep.subr.mxu0 0.0
    %68 = vmatpush1.msra.mxu0 0.0
    %69 = vmatprep.subr.mxu0 0.0
    %70 = vmatpush1.msra.mxu0 0.0
    %71 = vmatprep.subr.mxu0 0.0
    %72 = vmatpush1.msra.mxu0 0.0
    %73 = vmatprep.subr.mxu0 0.0
    %74 = vmatpush1.msra.mxu0 0.0
    %75 = vmatprep.subr.mxu0 0.0
    %76 = vmatpush1.msra.mxu0 0.0
    %77 = vmatprep.subr.mxu0 0.0
    %78 = vmatpush1.msra.mxu0 0.0
    %79 = vmatprep.subr.mxu0 0.0
    %80 = vmatpush1.msra.mxu0 0.0
    %81 = vmatprep.subr.mxu0 0.0
    %82 = vmatpush1.msra.mxu0 0.0
    %83 = vmatprep.subr.mxu0 0.0
    %84 = vmatpush1.msra.mxu0 0.0
    %85 = vmatprep.subr.mxu0 0.0
    %86 = vmatpush1.msra.mxu0 0.0
    %87 = vmatprep.subr.mxu0 0.0
    %88 = vmatpush1.msra.mxu0 0.0
    %89 = vmatprep.subr.mxu0 0.0
    %90 = vmatpush1.msra.mxu0 0.0
    %91 = vmatprep.subr.mxu0 0.0
    %92 = vmatpush1.msra.mxu0 0.0
    %93 = vmatprep.subr.mxu0 0.0
    %94 = vmatpush1.msra.mxu0 0.0
    %95 = vmatprep.subr.mxu0 0.0
    %96 = vmatpush1.msra.mxu0 0.0
    %97 = vmatprep.subr.mxu0 0.0
    %98 = vmatpush1.msra.mxu0 0.0
    %99 = vmatprep.subr.mxu0 0.0
    %100 = vmatpush1.msra.mxu0 0.0
    %101 = vmatprep.subr.mxu0 0.0
    %102 = vmatpush1.msra.mxu0 0.0
    %103 = vmatprep.subr.mxu0 0.0
    %104 = vmatpush1.msra.mxu0 0.0
    %105 = vmatprep.subr.mxu0 0.0
    %106 = vmatpush1.msra.mxu0 0.0
    %107 = vmatprep.subr.mxu0 0.0
    %108 = vmatpush1.msra.mxu0 0.0
    %109 = vmatprep.mubr.f32.mxu0 0.0
    %110 = vmatmul.mubr.f32.gmra.mrb[0].mxu0 %v43
    %v111 = vpop.f32.mrb[0].mxu0
    %v112 = vadd.f32 %v39, %v111
    %v113 = vpop.f32.mrb[0].mxu0
    %114 = vdwg.mxu0
    %115 = vst [vmem:[#allocation5] sm:$0xff] %v112
    %s116 = scalar_lea.vmem [#allocation2], 8
    %v117 = vld [vmem:[%s116] sm:$0xff]
    %118 = vrot.lane.b32.xlu0 %v117, 1
    %v119 = vpop.permute.xlu0 %118
    %120 = vrot.lane.b32.xlu0 %v117, 127
    %v121 = vpop.permute.xlu0 %120
    %122 = vmatprep.subr.mxu0 0.0
    %123 = vmatpush1.msra.mxu0 %v119
    %124 = vmatprep.subr.mxu0 0.0
    %125 = vmatpush1.msra.mxu0 %v117
    %126 = vmatprep.subr.mxu0 0.0
    %127 = vmatpush1.msra.mxu0 %v121
    %128 = vmatprep.subr.mxu0 0.0
    %129 = vmatpush1.msra.mxu0 0.0
    %130 = vmatprep.subr.mxu0 0.0
    %131 = vmatpush1.msra.mxu0 0.0
    %132 = vmatprep.subr.mxu0 0.0
    %133 = vmatpush1.msra.mxu0 0.0
    %134 = vmatprep.subr.mxu0 0.0
    %135 = vmatpush1.msra.mxu0 0.0
    %136 = vmatprep.subr.mxu0 0.0
    %137 = vmatpush1.msra.mxu0 0.0
    %138 = vmatprep.subr.mxu0 0.0
    %139 = vmatpush1.msra.mxu0 0.0
    %140 = vmatprep.subr.mxu0 0.0
    %141 = vmatpush1.msra.mxu0 0.0
    %142 = vmatprep.subr.mxu0 0.0
    %143 = vmatpush1.msra.mxu0 0.0
    %144 = vmatprep.subr.mxu0 0.0
    %145 = vmatpush1.msra.mxu0 0.0
    %146 = vmatprep.subr.mxu0 0.0
    %147 = vmatpush1.msra.mxu0 0.0
    %148 = vmatprep.subr.mxu0 0.0
    %149 = vmatpush1.msra.mxu0 0.0
    %150 = vmatprep.subr.mxu0 0.0
    %151 = vmatpush1.msra.mxu0 0.0
    %152 = vmatprep.subr.mxu0 0.0
    %153 = vmatpush1.msra.mxu0 0.0
    %154 = vmatprep.subr.mxu0 0.0
    %155 = vmatpush1.msra.mxu0 0.0
    %156 = vmatprep.subr.mxu0 0.0
    %157 = vmatpush1.msra.mxu0 0.0
    %158 = vmatprep.subr.mxu0 0.0
    %159 = vmatpush1.msra.mxu0 0.0
    %160 = vmatprep.subr.mxu0 0.0
    %161 = vmatpush1.msra.mxu0 0.0
    %162 = vmatprep.subr.mxu0 0.0
    %163 = vmatpush1.msra.mxu0 0.0
    %164 = vmatprep.subr.mxu0 0.0
    %165 = vmatpush1.msra.mxu0 0.0
    %166 = vmatprep.subr.mxu0 0.0
    %167 = vmatpush1.msra.mxu0 0.0
    %168 = vmatprep.subr.mxu0 0.0
    %169 = vmatpush1.msra.mxu0 0.0
    %170 = vmatprep.subr.mxu0 0.0
    %171 = vmatpush1.msra.mxu0 0.0
    %172 = vmatprep.subr.mxu0 0.0
    %173 = vmatpush1.msra.mxu0 0.0
    %174 = vmatprep.subr.mxu0 0.0
    %175 = vmatpush1.msra.mxu0 0.0
    %176 = vmatprep.subr.mxu0 0.0
    %177 = vmatpush1.msra.mxu0 0.0
    %178 = vmatprep.subr.mxu0 0.0
    %179 = vmatpush1.msra.mxu0 0.0
    %180 = vmatprep.subr.mxu0 0.0
    %181 = vmatpush1.msra.mxu0 0.0
    %182 = vmatprep.subr.mxu0 0.0
    %183 = vmatpush1.msra.mxu0 0.0
    %184 = vmatprep.subr.mxu0 0.0
    %185 = vmatpush1.msra.mxu0 0.0
    %186 = vmatprep.mubr.f32.mxu0 0.0
    %187 = vmatmul.mubr.f32.gmra.mrb[0].mxu0 %v43
    %v188 = vpop.f32.mrb[0].mxu0
    %v189 = vadd.f32 %v39, %v188
    %v190 = vpop.f32.mrb[0].mxu0
    %191 = vdwg.mxu0
    %s192 = scalar_lea.vmem [#allocation5], 8
    %193 = vst [vmem:[%s192] sm:$0xff] %v189
    // Predicated region
    $region18: #{tpu_custom_call.1} parent=1 // pred_check
      _
    $region19: #{tpu_custom_call.1} parent=1 // pred_check_branch
      %195 = sbr.rel (0) target = $region21
    $region20: #{tpu_custom_call.1} parent=1 // pred_region
      %s197 = ssub.s32 256, 256
      %198 = vsyncadd [#allocation4], %s197
      %s199 = sshll.u32 [#allocation5], 4
      %s200 = int_to_ptr.vmem [resolvable:$true] %s199
      %205 = dma.vmem_to_hbm [thread:$0]  %s200, 256, %s3, [#allocation4], 128, 128, 8
    $region21: #{tpu_custom_call.1} parent=1 // pred_fallthru
      _
    // Predicated region
    $region22: #{tpu_custom_call.1} parent=1 // pred_check
      _
    $region23: #{tpu_custom_call.1} parent=1 // pred_check_branch
      %207 = sbr.rel (0) target = $region25
    $region24: #{tpu_custom_call.1} parent=1 // pred_region
      %208 = dma.done [#allocation4], 256
    $region25: #{tpu_custom_call.1} parent=1 // pred_fallthru
      _
    %209 = vsyncpa [#allocation3], 1
    %210 = vsyncpa [#allocation4], 1

</llo_original>
